<compile_context>
chip_gen: v6e
topology: v6e:2x2x1
jax: 0.10.0
libtpu: 0.0.40
codegen_flags: <defaults>
</compile_context>

<pallas_src>
import functools

import jax
import jax.numpy as jnp
from jax.experimental import pallas as pl
from jax.experimental.pallas import tpu as pltpu


# ----------------------------------------------------------------------------
# Bit-reversal permutation: with leaves stored in bit-reversed order, at every
# tree level the left children occupy rows [0 : n/2) and the right children
# rows [n/2 : n), and parents come out again in bit-reversed order.
# ----------------------------------------------------------------------------
def _bit_reversal_perm(n: int):
    bits = n.bit_length() - 1          # n is a power of two
    perm = []
    for i in range(n):
        r = 0
        for k in range(bits):
            r |= ((i >> k) & 1) << (bits - 1 - k)
        perm.append(r)
    return jnp.asarray(perm, dtype=jnp.int32)


# ----------------------------------------------------------------------------
# Fused tree kernel: full bottom-up + top-down propagation in one pallas_call.
#
# Row layout of activations: rows are (tree-node-in-bitrev-order, batch),
# i.e. row = node_pos * batch + b; lane dim is the (zero-padded) hidden Hp.
# ----------------------------------------------------------------------------
def _tree_kernel(leaves_ref, w_bu_ref, b_bu_ref, w_td_ref, b_td_ref,
                 root_ref, down_ref, hbuf, dbuf, *, batch, n_leaves):
    w_bu = w_bu_ref[...]            # (2*Hp, Hp) compute dtype, fused [W_l ; W_r]
    w_td = w_td_ref[...]            # (2*Hp, Hp) compute dtype, fused [U ; V]
    b_bu = b_bu_ref[...]            # (1, Hp) f32
    b_td = b_td_ref[...]            # (1, Hp) f32
    cdt = w_bu.dtype                # MXU operand dtype (bf16 by default)

    def affine(xa, xb, w, b):
        # single fused (N, 2*Hp) @ (2*Hp, Hp) MXU matmul, f32 accumulate,
        # f32 bias + tanh epilogue (v5e has no bf16 VPU/EUP).
        x = jnp.concatenate([xa, xb], axis=-1)        # lane concat, tile-aligned
        acc = jnp.dot(x, w, preferred_element_type=jnp.float32)
        return jnp.tanh(acc + b)

    if n_leaves == 1:               # degenerate tree: root == leaf
        x32 = leaves_ref[...].astype(jnp.float32)
        root_ref[...] = x32
        down_ref[...] = x32
        return

    # ---------------- bottom-up (DFS post-order == leaves-to-root sweep) ----
    # level_views: (ref, row_offset, n_rows) for every non-root level,
    # so the top-down pass can re-read the bottom-up states from VMEM.
    level_views = [(leaves_ref, 0, n_leaves * batch)]
    src_ref, src_off = leaves_ref, 0
    hbuf_off = 0
    n = n_leaves
    parent_f32 = None
    while n > 1:
        rows = n * batch
        half = rows // 2
        left = src_ref[src_off:src_off + half, :]          # left children
        right = src_ref[src_off + half:src_off + rows, :]  # right children
        parent_f32 = affine(left, right, w_bu, b_bu)       # (half, Hp) f32
        n //= 2
        if n > 1:                                          # keep for top-down
            hbuf[hbuf_off:hbuf_off + half, :] = parent_f32.astype(cdt)
            level_views.append((hbuf, hbuf_off, half))
            src_ref, src_off = hbuf, hbuf_off
            hbuf_off += half
    root_ref[...] = parent_f32                             # (B, Hp) f32

    # ---------------- top-down (BFS from the root) --------------------------
    # root down-state := root bottom-up state; each parent broadcasts its
    # down-state to both children via two contiguous VMEM stores into dbuf.
    down_f32 = parent_f32
    for (ref, off, rows) in reversed(level_views):
        m = rows // 2
        d_cdt = down_f32.astype(cdt)
        dbuf[0:m, :] = d_cdt            # down-state for the left children
        dbuf[m:rows, :] = d_cdt         # ... and (same parents) right children
        h_lvl = ref[off:off + rows, :]  # bottom-up states of this level
        down_f32 = affine(dbuf[0:rows, :], h_lvl, w_td, b_td)   # (rows, Hp) f32
    down_ref[...] = down_f32            # leaf-level down states, f32


@functools.partial(jax.jit, static_argnames=("hidden",))
def _tree_forward(leaves, w_bu, b_bu, w_td, b_td, *, hidden):
    b, n_leaves, hr = leaves.shape
    hp = w_bu.shape[1]
    cdt = w_bu.dtype
    perm = _bit_reversal_perm(n_leaves)

    # layout plumbing (once, in the wrapper): bit-reverse the node order,
    # go (B, L, H) -> (L, B, H) -> (L*B, H), zero-pad lanes H -> Hp, cast.
    x = jnp.take(leaves, perm, axis=1)
    x = jnp.transpose(x, (1, 0, 2)).reshape(n_leaves * b, hr)
    x = jnp.pad(x, ((0, 0), (0, hp - hr))).astype(cdt)

    kernel = functools.partial(_tree_kernel, batch=b, n_leaves=n_leaves)
    root_p, down_p = pl.pallas_call(
        kernel,
        out_shape=(jax.ShapeDtypeStruct((b, hp), jnp.float32),
                   jax.ShapeDtypeStruct((n_leaves * b, hp), jnp.float32)),
        grid=(1,),
        in_specs=[
            pl.BlockSpec((n_leaves * b, hp), lambda i: (0, 0)),   # leaves
            pl.BlockSpec((2 * hp, hp), lambda i: (0, 0)),         # fused W_bu
            pl.BlockSpec((1, hp), lambda i: (0, 0)),              # b_bu
            pl.BlockSpec((2 * hp, hp), lambda i: (0, 0)),         # fused W_td
            pl.BlockSpec((1, hp), lambda i: (0, 0)),              # b_td
        ],
        out_specs=(
            pl.BlockSpec((b, hp), lambda i: (0, 0)),              # root h
            pl.BlockSpec((n_leaves * b, hp), lambda i: (0, 0)),   # leaf down
        ),
        scratch_shapes=[
            pltpu.VMEM((n_leaves * b, hp), cdt),   # hbuf: bottom-up levels
            pltpu.VMEM((n_leaves * b, hp), cdt),   # dbuf: parent broadcast
        ],
        compiler_params=pltpu.CompilerParams(
            dimension_semantics=("arbitrary",),
            vmem_limit_bytes=32 * 1024 * 1024,
        ),
    )(x, w_bu, b_bu, w_td, b_td)

    root_h = root_p[:, :hidden]                                   # (B, H)
    down = down_p.reshape(n_leaves, b, hp)[:, :, :hidden]         # (L, B, H)
    down = jnp.transpose(down, (1, 0, 2))                         # (B, L, H)
    leaf_down = jnp.take(down, perm, axis=1)                      # un-bitrev
    return root_h, leaf_down


# ----------------------------------------------------------------------------
# TreeStructureNetwork wrapper.
# ----------------------------------------------------------------------------
class TreeStructureNetworkPallas:
    def __init__(self, hidden: int, n_leaves: int, key,
                 compute_dtype=jnp.bfloat16):
        assert n_leaves >= 1 and (n_leaves & (n_leaves - 1)) == 0, \
            "perfect binary tree: n_leaves must be a power of two"
        self.hidden = hidden
        self.n_leaves = n_leaves
        self.compute_dtype = compute_dtype
        self.hp = ((hidden + 127) // 128) * 128        # lane-dense padded hidden

        k = jax.random.split(key, 6)
        scale = 1.0 / jnp.sqrt(jnp.float32(hidden))
        # bottom-up parameters (f32 "master" copies, used by the reference)
        self.w_l = (jax.random.normal(k[0], (hidden, hidden)) * scale).astype(jnp.float32)
        self.w_r = (jax.random.normal(k[1], (hidden, hidden)) * scale).astype(jnp.float32)
        self.b_bu = (jax.random.normal(k[2], (1, hidden)) * 0.01).astype(jnp.float32)
        # top-down parameters
        self.u = (jax.random.normal(k[3], (hidden, hidden)) * scale).astype(jnp.float32)
        self.v = (jax.random.normal(k[4], (hidden, hidden)) * scale).astype(jnp.float32)
        self.b_td = (jax.random.normal(k[5], (1, hidden)) * 0.01).astype(jnp.float32)

        # Fused + lane-padded kernel-side parameters (built once at init).
        self.w_bu_fused = self._fuse_pad(self.w_l, self.w_r)   # (2*Hp, Hp) bf16
        self.w_td_fused = self._fuse_pad(self.u, self.v)       # (2*Hp, Hp) bf16
        self.b_bu_pad = self._pad_bias(self.b_bu)              # (1, Hp) f32
        self.b_td_pad = self._pad_bias(self.b_td)              # (1, Hp) f32

    def _fuse_pad(self, wa, wb):
        h, hp = self.hidden, self.hp
        w = jnp.zeros((2 * hp, hp), jnp.float32)
        w = w.at[0:h, 0:h].set(wa)          # rows [0,Hp)   <-> first operand
        w = w.at[hp:hp + h, 0:h].set(wb)    # rows [Hp,2Hp) <-> second operand
        return w.astype(self.compute_dtype)

    def _pad_bias(self, bias):
        return jnp.pad(bias, ((0, 0), (0, self.hp - self.hidden))).astype(jnp.float32)

    def forward(self, leaves):
        return _tree_forward(leaves, self.w_bu_fused, self.b_bu_pad,
                             self.w_td_fused, self.b_td_pad,
                             hidden=self.hidden)


# ----------------------------------------------------------------------------
# Pure-JAX reference mirroring the kernel math (same bf16 operand cast, f32
# accumulate / bias / tanh) on the original un-fused, un-padded parameters.
# ----------------------------------------------------------------------------
def _ref_forward(net, leaves):
    cdt = net.compute_dtype

    def affine(xa, xb, wa, wb, bias):
        acc = jnp.dot(xa.astype(cdt), wa.astype(cdt),
                      preferred_element_type=jnp.float32)
        acc = acc + jnp.dot(xb.astype(cdt), wb.astype(cdt),
                            preferred_element_type=jnp.float32)
        return jnp.tanh(acc + bias)

    b, n, h = leaves.shape
    states = [leaves.astype(jnp.float32)]
    cur = states[0]
    while cur.shape[1] > 1:
        m = cur.shape[1]
        left = cur[:, 0::2, :].reshape(b * (m // 2), h)
        right = cur[:, 1::2, :].reshape(b * (m // 2), h)
        cur = affine(left, right, net.w_l, net.w_r, net.b_bu).reshape(b, m // 2, h)
        states.append(cur)
    down = states[-1]
    for lvl in range(len(states) - 2, -1, -1):
        h_lvl = states[lvl]
        m = h_lvl.shape[1]
        parent_rep = jnp.repeat(down, 2, axis=1)
        down = affine(parent_rep.reshape(b * m, h), h_lvl.reshape(b * m, h),
                      net.u, net.v, net.b_td).reshape(b, m, h)
    return states[-1][:, 0, :], down


if __name__ == "__main__":
    B, L, H = 2, 8, 32          # 8 leaves => perfect binary tree of depth 3

    key = jax.random.PRNGKey(0)
    k_x, k_params = jax.random.split(key)
    leaves = jax.random.normal(k_x, (B, L, H), dtype=jnp.float32)

    net = TreeStructureNetworkPallas(hidden=H, n_leaves=L, key=k_params)

    root_h, leaf_down = net.forward(leaves)
    root_h = jax.block_until_ready(root_h)
    leaf_down = jax.block_until_ready(leaf_down)

    # sanity check against the pure-JAX reference (same bf16-operand math)
    ref_root, ref_down = _ref_forward(net, leaves)
    assert root_h.shape == (B, H) and leaf_down.shape == (B, L, H)
    assert jnp.allclose(root_h, ref_root, atol=1e-3, rtol=1e-3)
    assert jnp.allclose(leaf_down, ref_down, atol=1e-3, rtol=1e-3)

    print("KERNEL_OK")
</pallas_src>

<mosaic_0001>
module attributes {stable_mosaic.version = 11 : i64} {
  func.func @_tree_kernel(%arg0: i32, %arg1: memref<16x128xbf16, #tpu.memory_space<vmem>>, %arg2: memref<256x128xbf16, #tpu.memory_space<vmem>>, %arg3: memref<1x128xf32, #tpu.memory_space<vmem>>, %arg4: memref<256x128xbf16, #tpu.memory_space<vmem>>, %arg5: memref<1x128xf32, #tpu.memory_space<vmem>>, %arg6: memref<2x128xf32, #tpu.memory_space<vmem>>, %arg7: memref<16x128xf32, #tpu.memory_space<vmem>>, %arg8: memref<16x128xbf16, #tpu.memory_space<vmem>>, %arg9: memref<16x128xbf16, #tpu.memory_space<vmem>>) attributes {dimension_semantics = [#tpu.dimension_semantics<arbitrary>], iteration_bounds = array<i64: 1>, scalar_prefetch = 0 : i64, scratch_operands = 2 : i64, tpu.core_type = #tpu.core_type<tc>, window_params = [{pipeline_mode = #tpu.pipeline_mode<synchronous>, transform_indices = @transform_0, window_bounds = array<i64: 16, 128>}, {pipeline_mode = #tpu.pipeline_mode<synchronous>, transform_indices = @transform_1, window_bounds = array<i64: 256, 128>}, {pipeline_mode = #tpu.pipeline_mode<synchronous>, transform_indices = @transform_2, window_bounds = array<i64: 1, 128>}, {pipeline_mode = #tpu.pipeline_mode<synchronous>, transform_indices = @transform_3, window_bounds = array<i64: 256, 128>}, {pipeline_mode = #tpu.pipeline_mode<synchronous>, transform_indices = @transform_4, window_bounds = array<i64: 1, 128>}, {pipeline_mode = #tpu.pipeline_mode<synchronous>, transform_indices = @transform_5, window_bounds = array<i64: 2, 128>}, {pipeline_mode = #tpu.pipeline_mode<synchronous>, transform_indices = @transform_6, window_bounds = array<i64: 16, 128>}]} {
    %c0 = arith.constant 0 : index
    %c0_0 = arith.constant 0 : index
    %0 = vector.load %arg2[%c0, %c0_0] : memref<256x128xbf16, #tpu.memory_space<vmem>>, vector<256x128xbf16>
    %c0_1 = arith.constant 0 : index
    %c0_2 = arith.constant 0 : index
    %1 = vector.load %arg4[%c0_1, %c0_2] : memref<256x128xbf16, #tpu.memory_space<vmem>>, vector<256x128xbf16>
    %c0_3 = arith.constant 0 : index
    %c0_4 = arith.constant 0 : index
    %2 = vector.load %arg3[%c0_3, %c0_4] : memref<1x128xf32, #tpu.memory_space<vmem>>, vector<1x128xf32>
    %c0_5 = arith.constant 0 : index
    %c0_6 = arith.constant 0 : index
    %3 = vector.load %arg5[%c0_5, %c0_6] : memref<1x128xf32, #tpu.memory_space<vmem>>, vector<1x128xf32>
    %c0_7 = arith.constant 0 : index
    %c0_8 = arith.constant 0 : index
    %4 = vector.load %arg1[%c0_7, %c0_8] : memref<16x128xbf16, #tpu.memory_space<vmem>>, vector<8x128xbf16>
    %c8 = arith.constant 8 : index
    %c0_9 = arith.constant 0 : index
    %5 = vector.load %arg1[%c8, %c0_9] : memref<16x128xbf16, #tpu.memory_space<vmem>>, vector<8x128xbf16>
    %6 = tpu.concatenate %4, %5 in 1 : vector<8x128xbf16>, vector<8x128xbf16> -> vector<8x256xbf16>
    %cst = arith.constant dense<0.000000e+00> : vector<8x128xf32>
    %7 = tpu.matmul %6, %0, %cst {dimension_numbers = #tpu.dot_dimension_numbers<[1], [0], [0], [1], [0, 0, 1, 1], [], []>} : vector<8x256xbf16>, vector<256x128xbf16>, vector<8x128xf32> -> vector<8x128xf32>
    %8 = vector.broadcast %2 : vector<1x128xf32> to vector<8x128xf32>
    %9 = arith.addf %7, %8 : vector<8x128xf32>
    %10 = math.tanh %9 : vector<8x128xf32>
    %11 = arith.truncf %10 : vector<8x128xf32> to vector<8x128xbf16>
    %c0_10 = arith.constant 0 : index
    %c0_11 = arith.constant 0 : index
    %12 = vector.load %arg8[%c0_10, %c0_11] : memref<16x128xbf16, #tpu.memory_space<vmem>>, vector<8x128xbf16>
    tpu.vector_store %arg8[%c0_10, %c0_11], %11 {strides = array<i32>} : memref<16x128xbf16, #tpu.memory_space<vmem>>, vector<8x128xbf16>,
    %c0_12 = arith.constant 0 : index
    %c0_13 = arith.constant 0 : index
    %13 = vector.load %arg8[%c0_12, %c0_13] : memref<16x128xbf16, #tpu.memory_space<vmem>>, vector<4x128xbf16>
    %c4 = arith.constant 4 : index
    %c0_14 = arith.constant 0 : index
    %14 = vector.load %arg8[%c4, %c0_14] : memref<16x128xbf16, #tpu.memory_space<vmem>>, vector<4x128xbf16>
    %15 = tpu.concatenate %13, %14 in 1 : vector<4x128xbf16>, vector<4x128xbf16> -> vector<4x256xbf16>
    %cst_15 = arith.constant dense<0.000000e+00> : vector<4x128xf32>
    %16 = tpu.matmul %15, %0, %cst_15 {dimension_numbers = #tpu.dot_dimension_numbers<[1], [0], [0], [1], [0, 0, 1, 1], [], []>} : vector<4x256xbf16>, vector<256x128xbf16>, vector<4x128xf32> -> vector<4x128xf32>
    %17 = vector.broadcast %2 : vector<1x128xf32> to vector<4x128xf32>
    %18 = arith.addf %16, %17 : vector<4x128xf32>
    %19 = math.tanh %18 : vector<4x128xf32>
    %20 = arith.truncf %19 : vector<4x128xf32> to vector<4x128xbf16>
    %c8_16 = arith.constant 8 : index
    %c0_17 = arith.constant 0 : index
    %21 = vector.load %arg8[%c8_16, %c0_17] : memref<16x128xbf16, #tpu.memory_space<vmem>>, vector<4x128xbf16>
    tpu.vector_store %arg8[%c8_16, %c0_17], %20 {strides = array<i32>} : memref<16x128xbf16, #tpu.memory_space<vmem>>, vector<4x128xbf16>,
    %c8_18 = arith.constant 8 : index
    %c0_19 = arith.constant 0 : index
    %22 = vector.load %arg8[%c8_18, %c0_19] : memref<16x128xbf16, #tpu.memory_space<vmem>>, vector<2x128xbf16>
    %c10 = arith.constant 10 : index
    %c0_20 = arith.constant 0 : index
    %23 = vector.load %arg8[%c10, %c0_20] : memref<16x128xbf16, #tpu.memory_space<vmem>>, vector<2x128xbf16>
    %24 = tpu.concatenate %22, %23 in 1 : vector<2x128xbf16>, vector<2x128xbf16> -> vector<2x256xbf16>
    %cst_21 = arith.constant dense<0.000000e+00> : vector<2x128xf32>
    %25 = tpu.matmul %24, %0, %cst_21 {dimension_numbers = #tpu.dot_dimension_numbers<[1], [0], [0], [1], [0, 0, 1, 1], [], []>} : vector<2x256xbf16>, vector<256x128xbf16>, vector<2x128xf32> -> vector<2x128xf32>
    %26 = vector.broadcast %2 : vector<1x128xf32> to vector<2x128xf32>
    %27 = arith.addf %25, %26 : vector<2x128xf32>
    %28 = math.tanh %27 : vector<2x128xf32>
    %c0_22 = arith.constant 0 : index
    %c0_23 = arith.constant 0 : index
    %29 = vector.load %arg6[%c0_22, %c0_23] : memref<2x128xf32, #tpu.memory_space<vmem>>, vector<2x128xf32>
    tpu.vector_store %arg6[%c0_22, %c0_23], %28 {strides = array<i32>} : memref<2x128xf32, #tpu.memory_space<vmem>>, vector<2x128xf32>,
    %30 = arith.truncf %28 : vector<2x128xf32> to vector<2x128xbf16>
    %c0_24 = arith.constant 0 : index
    %c0_25 = arith.constant 0 : index
    %31 = vector.load %arg9[%c0_24, %c0_25] : memref<16x128xbf16, #tpu.memory_space<vmem>>, vector<2x128xbf16>
    tpu.vector_store %arg9[%c0_24, %c0_25], %30 {strides = array<i32>} : memref<16x128xbf16, #tpu.memory_space<vmem>>, vector<2x128xbf16>,
    %c2 = arith.constant 2 : index
    %c0_26 = arith.constant 0 : index
    %32 = vector.load %arg9[%c2, %c0_26] : memref<16x128xbf16, #tpu.memory_space<vmem>>, vector<2x128xbf16>
    tpu.vector_store %arg9[%c2, %c0_26], %30 {strides = array<i32>} : memref<16x128xbf16, #tpu.memory_space<vmem>>, vector<2x128xbf16>,
    %c8_27 = arith.constant 8 : index
    %c0_28 = arith.constant 0 : index
    %33 = vector.load %arg8[%c8_27, %c0_28] : memref<16x128xbf16, #tpu.memory_space<vmem>>, vector<4x128xbf16>
    %c0_29 = arith.constant 0 : index
    %c0_30 = arith.constant 0 : index
    %34 = vector.load %arg9[%c0_29, %c0_30] : memref<16x128xbf16, #tpu.memory_space<vmem>>, vector<4x128xbf16>
    %35 = tpu.concatenate %34, %33 in 1 : vector<4x128xbf16>, vector<4x128xbf16> -> vector<4x256xbf16>
    %cst_31 = arith.constant dense<0.000000e+00> : vector<4x128xf32>
    %36 = tpu.matmul %35, %1, %cst_31 {dimension_numbers = #tpu.dot_dimension_numbers<[1], [0], [0], [1], [0, 0, 1, 1], [], []>} : vector<4x256xbf16>, vector<256x128xbf16>, vector<4x128xf32> -> vector<4x128xf32>
    %37 = vector.broadcast %3 : vector<1x128xf32> to vector<4x128xf32>
    %38 = arith.addf %36, %37 : vector<4x128xf32>
    %39 = math.tanh %38 : vector<4x128xf32>
    %40 = arith.truncf %39 : vector<4x128xf32> to vector<4x128xbf16>
    %c0_32 = arith.constant 0 : index
    %c0_33 = arith.constant 0 : index
    %41 = vector.load %arg9[%c0_32, %c0_33] : memref<16x128xbf16, #tpu.memory_space<vmem>>, vector<4x128xbf16>
    tpu.vector_store %arg9[%c0_32, %c0_33], %40 {strides = array<i32>} : memref<16x128xbf16, #tpu.memory_space<vmem>>, vector<4x128xbf16>,
    %c4_34 = arith.constant 4 : index
    %c0_35 = arith.constant 0 : index
    %42 = vector.load %arg9[%c4_34, %c0_35] : memref<16x128xbf16, #tpu.memory_space<vmem>>, vector<4x128xbf16>
    tpu.vector_store %arg9[%c4_34, %c0_35], %40 {strides = array<i32>} : memref<16x128xbf16, #tpu.memory_space<vmem>>, vector<4x128xbf16>,
    %c0_36 = arith.constant 0 : index
    %c0_37 = arith.constant 0 : index
    %43 = vector.load %arg8[%c0_36, %c0_37] : memref<16x128xbf16, #tpu.memory_space<vmem>>, vector<8x128xbf16>
    %c0_38 = arith.constant 0 : index
    %c0_39 = arith.constant 0 : index
    %44 = vector.load %arg9[%c0_38, %c0_39] : memref<16x128xbf16, #tpu.memory_space<vmem>>, vector<8x128xbf16>
    %45 = tpu.concatenate %44, %43 in 1 : vector<8x128xbf16>, vector<8x128xbf16> -> vector<8x256xbf16>
    %cst_40 = arith.constant dense<0.000000e+00> : vector<8x128xf32>
    %46 = tpu.matmul %45, %1, %cst_40 {dimension_numbers = #tpu.dot_dimension_numbers<[1], [0], [0], [1], [0, 0, 1, 1], [], []>} : vector<8x256xbf16>, vector<256x128xbf16>, vector<8x128xf32> -> vector<8x128xf32>
    %47 = vector.broadcast %3 : vector<1x128xf32> to vector<8x128xf32>
    %48 = arith.addf %46, %47 : vector<8x128xf32>
    %49 = math.tanh %48 : vector<8x128xf32>
    %50 = arith.truncf %49 : vector<8x128xf32> to vector<8x128xbf16>
    %c0_41 = arith.constant 0 : index
    %c0_42 = arith.constant 0 : index
    %51 = vector.load %arg9[%c0_41, %c0_42] : memref<16x128xbf16, #tpu.memory_space<vmem>>, vector<8x128xbf16>
    tpu.vector_store %arg9[%c0_41, %c0_42], %50 {strides = array<i32>} : memref<16x128xbf16, #tpu.memory_space<vmem>>, vector<8x128xbf16>,
    %c8_43 = arith.constant 8 : index
    %c0_44 = arith.constant 0 : index
    %52 = vector.load %arg9[%c8_43, %c0_44] : memref<16x128xbf16, #tpu.memory_space<vmem>>, vector<8x128xbf16>
    tpu.vector_store %arg9[%c8_43, %c0_44], %50 {strides = array<i32>} : memref<16x128xbf16, #tpu.memory_space<vmem>>, vector<8x128xbf16>,
    %c0_45 = arith.constant 0 : index
    %c0_46 = arith.constant 0 : index
    %53 = vector.load %arg1[%c0_45, %c0_46] : memref<16x128xbf16, #tpu.memory_space<vmem>>, vector<16x128xbf16>
    %c0_47 = arith.constant 0 : index
    %c0_48 = arith.constant 0 : index
    %54 = vector.load %arg9[%c0_47, %c0_48] : memref<16x128xbf16, #tpu.memory_space<vmem>>, vector<16x128xbf16>
    %55 = tpu.concatenate %54, %53 in 1 : vector<16x128xbf16>, vector<16x128xbf16> -> vector<16x256xbf16>
    %cst_49 = arith.constant dense<0.000000e+00> : vector<16x128xf32>
    %56 = tpu.matmul %55, %1, %cst_49 {dimension_numbers = #tpu.dot_dimension_numbers<[1], [0], [0], [1], [0, 0, 1, 1], [], []>} : vector<16x256xbf16>, vector<256x128xbf16>, vector<16x128xf32> -> vector<16x128xf32>
    %57 = vector.broadcast %3 : vector<1x128xf32> to vector<16x128xf32>
    %58 = arith.addf %56, %57 : vector<16x128xf32>
    %59 = math.tanh %58 : vector<16x128xf32>
    %c0_50 = arith.constant 0 : index
    %c0_51 = arith.constant 0 : index
    %60 = vector.load %arg7[%c0_50, %c0_51] : memref<16x128xf32, #tpu.memory_space<vmem>>, vector<16x128xf32>
    tpu.vector_store %arg7[%c0_50, %c0_51], %59 {strides = array<i32>} : memref<16x128xf32, #tpu.memory_space<vmem>>, vector<16x128xf32>,
    return
  }
  func.func @transform_0(%arg0: i32) -> (i32, i32) {
    %c0_i32 = arith.constant 0 : i32
    %c0_i32_0 = arith.constant 0 : i32
    %c0_i32_1 = arith.constant 0 : i32
    return %c0_i32, %c0_i32_0 : i32, i32
  }
  func.func @transform_1(%arg0: i32) -> (i32, i32) {
    %c0_i32 = arith.constant 0 : i32
    %c0_i32_0 = arith.constant 0 : i32
    %c0_i32_1 = arith.constant 0 : i32
    return %c0_i32, %c0_i32_0 : i32, i32
  }
  func.func @transform_2(%arg0: i32) -> (i32, i32) {
    %c0_i32 = arith.constant 0 : i32
    %c0_i32_0 = arith.constant 0 : i32
    %c0_i32_1 = arith.constant 0 : i32
    return %c0_i32, %c0_i32_0 : i32, i32
  }
  func.func @transform_3(%arg0: i32) -> (i32, i32) {
    %c0_i32 = arith.constant 0 : i32
    %c0_i32_0 = arith.constant 0 : i32
    %c0_i32_1 = arith.constant 0 : i32
    return %c0_i32, %c0_i32_0 : i32, i32
  }
  func.func @transform_4(%arg0: i32) -> (i32, i32) {
    %c0_i32 = arith.constant 0 : i32
    %c0_i32_0 = arith.constant 0 : i32
    %c0_i32_1 = arith.constant 0 : i32
    return %c0_i32, %c0_i32_0 : i32, i32
  }
  func.func @transform_5(%arg0: i32) -> (i32, i32) {
    %c0_i32 = arith.constant 0 : i32
    %c0_i32_0 = arith.constant 0 : i32
    %c0_i32_1 = arith.constant 0 : i32
    return %c0_i32, %c0_i32_0 : i32, i32
  }
  func.func @transform_6(%arg0: i32) -> (i32, i32) {
    %c0_i32 = arith.constant 0 : i32
    %c0_i32_0 = arith.constant 0 : i32
    %c0_i32_1 = arith.constant 0 : i32
    return %c0_i32, %c0_i32_0 : i32, i32
  }
}

</mosaic_0001>

<llo_original>
// kernel: _tree_forward.1
$region0: #{_tree_forward.1}
  #allocation0 [shape = 'u32[]', space=smem, size = 0x4, offset = 0x4, fixed_abs, tag = 'smem constant byte address 0x4 - core index']
  #allocation1 [shape = 'u32[144,128]{1,0:T(1,128)}', space=vmem, size = 0x12000, scoped, tag = 'internal scratch']
  #allocation2 [shape = 'bf16[16,128]{1,0:T(8,128)(2,1)}', space=vmem, size = 0x1000, scoped, tag = 'scratch operand']
  #allocation3 [shape = 'bf16[16,128]{1,0:T(8,128)(2,1)}', space=vmem, size = 0x1000, scoped, tag = 'scratch operand']
  %s0 = inlined_call_operand.vmem [shape: bf16[16,128], index: 0, kind: input, shape index: {}]
  %s1 = inlined_call_operand.hbm [shape: bf16[256,128], index: 1, kind: input, shape index: {}]
  %s2 = inlined_call_operand.vmem [shape: f32[1,128], index: 2, kind: input, shape index: {}]
  %s3 = inlined_call_operand.hbm [shape: bf16[256,128], index: 3, kind: input, shape index: {}]
  %s4 = inlined_call_operand.vmem [shape: f32[1,128], index: 4, kind: input, shape index: {}]
  %s5 = inlined_call_operand.hbm [shape: f32[2,128], index: 5, kind: output, shape index: {0}]
  %s6 = inlined_call_operand.vmem [shape: f32[16,128], index: 6, kind: output, shape index: {1}]
  %7 = xla_tuple %s5, %s6
  %s8 = sld [smem:[#allocation0]]
  $region46: #{_tree_forward.1} parent=0
    _
  %s10 = ssub.s32 1, %s8
  %s11 = scalar_select 0, %s10, %s8
  $region1: #{_tree_forward.1} parent=0
    #allocation4 [shape = 'u8[65536]{0}', space=vmem, size = 0x10000, scoped, tag = 'input window, operand 1, single buffered']
    #allocation5 [shape = 's32[1]{0}', space=sflag, size = 0x4, scoped, tag = 'scoped memory for _tree_forward.1']
    #allocation6 [shape = 's32[1]{0}', space=sflag, size = 0x4, scoped, tag = 'scoped memory for _tree_forward.1']
    #allocation7 [shape = 'u8[65536]{0}', space=vmem, size = 0x10000, scoped, tag = 'input window, operand 3, single buffered']
    #allocation8 [shape = 's32[1]{0}', space=sflag, size = 0x4, scoped, tag = 'scoped memory for _tree_forward.1']
    #allocation9 [shape = 'u8[1024]{0}', space=vmem, size = 0x400, scoped, tag = 'output window, operand 0, single buffered']
    %12 = vsyncpa [#allocation5], 0
    %13 = vsyncpa [#allocation8], 0
    %14 = vsyncpa [#allocation6], 0
    // Predicated region
    $region2: #{_tree_forward.1} parent=1 // pred_check
      _
    $region3: #{_tree_forward.1} parent=1 // pred_check_branch
      %16 = sbr.rel (0) target = $region5
    $region4: #{_tree_forward.1} parent=1 // pred_region
      _
    $region5: #{_tree_forward.1} parent=1 // pred_fallthru
      _
    // Predicated region
    $region6: #{_tree_forward.1} parent=1 // pred_check
      _
    $region7: #{_tree_forward.1} parent=1 // pred_check_branch
      %18 = sbr.rel (0) target = $region9
    $region8: #{_tree_forward.1} parent=1 // pred_region
      %s20 = ssub.s32 2048, 2048
      %21 = vsyncadd [#allocation5], %s20
      %s22 = sshll.u32 [#allocation4], 4
      %s23 = int_to_ptr.vmem [resolvable:$true] %s22
      %28 = dma.hbm_to_vmem [thread:$0]  %s1, 2048, %s23, [#allocation5], 64, 64, 4
    $region9: #{_tree_forward.1} parent=1 // pred_fallthru
      _
    // Predicated region
    $region10: #{_tree_forward.1} parent=1 // pred_check
      _
    $region11: #{_tree_forward.1} parent=1 // pred_check_branch
      %30 = sbr.rel (0) target = $region13
    $region12: #{_tree_forward.1} parent=1 // pred_region
      _
    $region13: #{_tree_forward.1} parent=1 // pred_fallthru
      _
    // Predicated region
    $region14: #{_tree_forward.1} parent=1 // pred_check
      _
    $region15: #{_tree_forward.1} parent=1 // pred_check_branch
      %32 = sbr.rel (0) target = $region17
    $region16: #{_tree_forward.1} parent=1 // pred_region
      %s34 = ssub.s32 2048, 2048
      %35 = vsyncadd [#allocation8], %s34
      %s36 = sshll.u32 [#allocation7], 4
      %s37 = int_to_ptr.vmem [resolvable:$true] %s36
      %42 = dma.hbm_to_vmem [thread:$0]  %s3, 2048, %s37, [#allocation8], 64, 64, 4
    $region17: #{_tree_forward.1} parent=1 // pred_fallthru
      _
    // Predicated region
    $region18: #{_tree_forward.1} parent=1 // pred_check
      _
    $region19: #{_tree_forward.1} parent=1 // pred_check_branch
      %44 = sbr.rel (0) target = $region21
    $region20: #{_tree_forward.1} parent=1 // pred_region
      _
    $region21: #{_tree_forward.1} parent=1 // pred_fallthru
      _
    // Predicated region
    $region22: #{_tree_forward.1} parent=1 // pred_check
      _
    $region23: #{_tree_forward.1} parent=1 // pred_check_branch
      %46 = sbr.rel (0) target = $region25
    $region24: #{_tree_forward.1} parent=1 // pred_region
      %47 = dma.done [#allocation5], 2048
    $region25: #{_tree_forward.1} parent=1 // pred_fallthru
      _
    // Predicated region
    $region26: #{_tree_forward.1} parent=1 // pred_check
      _
    $region27: #{_tree_forward.1} parent=1 // pred_check_branch
      %49 = sbr.rel (0) target = $region29
    $region28: #{_tree_forward.1} parent=1 // pred_region
      %50 = dma.done [#allocation8], 2048
    $region29: #{_tree_forward.1} parent=1 // pred_fallthru
      _
    %v52 = vld [vmem:[#allocation4] sm:$0xf]
    %v53 = vld [vmem:[#allocation4 + $0x4] sm:$0xf]
    %v54 = vld [vmem:[#allocation4 + $0x8] sm:$0xf]
    %v55 = vld [vmem:[#allocation4 + $0xc] sm:$0xf]
    %v56 = vld [vmem:[#allocation4 + $0x10] sm:$0xf]
    %v57 = vld [vmem:[#allocation4 + $0x14] sm:$0xf]
    %v58 = vld [vmem:[#allocation4 + $0x18] sm:$0xf]
    %v59 = vld [vmem:[#allocation4 + $0x1c] sm:$0xf]
    %v60 = vld [vmem:[#allocation4 + $0x20] sm:$0xf]
    %v61 = vld [vmem:[#allocation4 + $0x24] sm:$0xf]
    %v62 = vld [vmem:[#allocation4 + $0x28] sm:$0xf]
    %v63 = vld [vmem:[#allocation4 + $0x2c] sm:$0xf]
    %v64 = vld [vmem:[#allocation4 + $0x30] sm:$0xf]
    %v65 = vld [vmem:[#allocation4 + $0x34] sm:$0xf]
    %v66 = vld [vmem:[#allocation4 + $0x38] sm:$0xf]
    %v67 = vld [vmem:[#allocation4 + $0x3c] sm:$0xf]
    %v68 = vld [vmem:[#allocation4 + $0x40] sm:$0xf]
    %v69 = vld [vmem:[#allocation4 + $0x44] sm:$0xf]
    %v70 = vld [vmem:[#allocation4 + $0x48] sm:$0xf]
    %v71 = vld [vmem:[#allocation4 + $0x4c] sm:$0xf]
    %v72 = vld [vmem:[#allocation4 + $0x50] sm:$0xf]
    %v73 = vld [vmem:[#allocation4 + $0x54] sm:$0xf]
    %v74 = vld [vmem:[#allocation4 + $0x58] sm:$0xf]
    %v75 = vld [vmem:[#allocation4 + $0x5c] sm:$0xf]
    %v76 = vld [vmem:[#allocation4 + $0x60] sm:$0xf]
    %v77 = vld [vmem:[#allocation4 + $0x64] sm:$0xf]
    %v78 = vld [vmem:[#allocation4 + $0x68] sm:$0xf]
    %v79 = vld [vmem:[#allocation4 + $0x6c] sm:$0xf]
    %v80 = vld [vmem:[#allocation4 + $0x70] sm:$0xf]
    %v81 = vld [vmem:[#allocation4 + $0x74] sm:$0xf]
    %v82 = vld [vmem:[#allocation4 + $0x78] sm:$0xf]
    %v83 = vld [vmem:[#allocation4 + $0x7c] sm:$0xf]
    %v84 = vld [vmem:[#allocation7] sm:$0xf]
    %v85 = vld [vmem:[#allocation7 + $0x4] sm:$0xf]
    %v86 = vld [vmem:[#allocation7 + $0x8] sm:$0xf]
    %v87 = vld [vmem:[#allocation7 + $0xc] sm:$0xf]
    %v88 = vld [vmem:[#allocation7 + $0x10] sm:$0xf]
    %v89 = vld [vmem:[#allocation7 + $0x14] sm:$0xf]
    %v90 = vld [vmem:[#allocation7 + $0x18] sm:$0xf]
    %v91 = vld [vmem:[#allocation7 + $0x1c] sm:$0xf]
    %v92 = vld [vmem:[#allocation7 + $0x20] sm:$0xf]
    %v93 = vld [vmem:[#allocation7 + $0x24] sm:$0xf]
    %v94 = vld [vmem:[#allocation7 + $0x28] sm:$0xf]
    %v95 = vld [vmem:[#allocation7 + $0x2c] sm:$0xf]
    %v96 = vld [vmem:[#allocation7 + $0x30] sm:$0xf]
    %v97 = vld [vmem:[#allocation7 + $0x34] sm:$0xf]
    %v98 = vld [vmem:[#allocation7 + $0x38] sm:$0xf]
    %v99 = vld [vmem:[#allocation7 + $0x3c] sm:$0xf]
    %v100 = vld [vmem:[#allocation7 + $0x40] sm:$0xf]
    %v101 = vld [vmem:[#allocation7 + $0x44] sm:$0xf]
    %v102 = vld [vmem:[#allocation7 + $0x48] sm:$0xf]
    %v103 = vld [vmem:[#allocation7 + $0x4c] sm:$0xf]
    %v104 = vld [vmem:[#allocation7 + $0x50] sm:$0xf]
    %v105 = vld [vmem:[#allocation7 + $0x54] sm:$0xf]
    %v106 = vld [vmem:[#allocation7 + $0x58] sm:$0xf]
    %v107 = vld [vmem:[#allocation7 + $0x5c] sm:$0xf]
    %v108 = vld [vmem:[#allocation7 + $0x60] sm:$0xf]
    %v109 = vld [vmem:[#allocation7 + $0x64] sm:$0xf]
    %v110 = vld [vmem:[#allocation7 + $0x68] sm:$0xf]
    %v111 = vld [vmem:[#allocation7 + $0x6c] sm:$0xf]
    %v112 = vld [vmem:[#allocation7 + $0x70] sm:$0xf]
    %v113 = vld [vmem:[#allocation7 + $0x74] sm:$0xf]
    %v114 = vld [vmem:[#allocation7 + $0x78] sm:$0xf]
    %v115 = vld [vmem:[#allocation7 + $0x7c] sm:$0xf]
    %v116 = vld [vmem:[%s2] sm:$0x1]
    %v117 = vld [vmem:[%s4] sm:$0x1]
    %v118 = vld [vmem:[%s0] sm:$0xf]
    %v119 = vld [vmem:[%s0 + $0x4] sm:$0xf]
    %v121 = vlaneseq
    %v122 = vshrl.u32 %v121, 7
    %v123 = vsub.s32 0, %v122
    %v124 = vrot.slane %v116, %v123
    %v158 = vunpack.c.l.b16 %v52
    %v159 = vunpack.c.l.b16 %v53
    %v160 = vunpack.c.l.b16 %v54
    %v161 = vunpack.c.l.b16 %v55
    %v162 = vunpack.c.l.b16 %v56
    %v163 = vunpack.c.l.b16 %v57
    %v164 = vunpack.c.l.b16 %v58
    %v165 = vunpack.c.l.b16 %v59
    %v166 = vunpack.c.l.b16 %v60
    %v167 = vunpack.c.l.b16 %v61
    %v168 = vunpack.c.l.b16 %v62
    %v169 = vunpack.c.l.b16 %v63
    %v170 = vunpack.c.l.b16 %v64
    %v171 = vunpack.c.l.b16 %v65
    %v172 = vunpack.c.l.b16 %v66
    %v173 = vunpack.c.l.b16 %v67
    %v174 = vunpack.c.l.b16 %v68
    %v175 = vunpack.c.l.b16 %v69
    %v176 = vunpack.c.l.b16 %v70
    %v177 = vunpack.c.l.b16 %v71
    %v178 = vunpack.c.l.b16 %v72
    %v179 = vunpack.c.l.b16 %v73
    %v180 = vunpack.c.l.b16 %v74
    %v181 = vunpack.c.l.b16 %v75
    %v182 = vunpack.c.l.b16 %v76
    %v183 = vunpack.c.l.b16 %v77
    %v184 = vunpack.c.l.b16 %v78
    %v185 = vunpack.c.l.b16 %v79
    %v186 = vunpack.c.l.b16 %v80
    %v187 = vunpack.c.l.b16 %v81
    %v188 = vunpack.c.l.b16 %v82
    %v189 = vunpack.c.l.b16 %v83
    %v190 = vpack.c.b16 %v159, %v158
    %v191 = vpack.c.b16 %v161, %v160
    %v192 = vpack.c.b16 %v163, %v162
    %v193 = vpack.c.b16 %v165, %v164
    %v194 = vpack.c.b16 %v167, %v166
    %v195 = vpack.c.b16 %v169, %v168
    %v196 = vpack.c.b16 %v171, %v170
    %v197 = vpack.c.b16 %v173, %v172
    %v198 = vpack.c.b16 %v175, %v174
    %v199 = vpack.c.b16 %v177, %v176
    %v200 = vpack.c.b16 %v179, %v178
    %v201 = vpack.c.b16 %v181, %v180
    %v202 = vpack.c.b16 %v183, %v182
    %v203 = vpack.c.b16 %v185, %v184
    %v204 = vpack.c.b16 %v187, %v186
    %v205 = vpack.c.b16 %v189, %v188
    %222 = vmatprep.subr.bf16.mxu0 0
    %223 = vmatpush1.bf16.msra.mxu0 %v197
    %224 = vmatprep.subr.bf16.mxu0 0
    %225 = vmatpush1.bf16.msra.mxu0 %v196
    %226 = vmatprep.subr.bf16.mxu0 0
    %227 = vmatpush1.bf16.msra.mxu0 %v195
    %228 = vmatprep.subr.bf16.mxu0 0
    %229 = vmatpush1.bf16.msra.mxu0 %v194
    %230 = vmatprep.subr.bf16.mxu0 0
    %231 = vmatpush1.bf16.msra.mxu0 %v193
    %232 = vmatprep.subr.bf16.mxu0 0
    %233 = vmatpush1.bf16.msra.mxu0 %v192
    %234 = vmatprep.subr.bf16.mxu0 0
    %235 = vmatpush1.bf16.msra.mxu0 %v191
    %236 = vmatprep.subr.bf16.mxu0 0
    %237 = vmatpush1.bf16.msra.mxu0 %v190
    %238 = vmatprep.subr.bf16.mxu0 0
    %239 = vmatpush2.bf16.msra.mxu0 %v205
    %240 = vmatprep.subr.bf16.mxu0 0
    %241 = vmatpush2.bf16.msra.mxu0 %v204
    %242 = vmatprep.subr.bf16.mxu0 0
    %243 = vmatpush2.bf16.msra.mxu0 %v203
    %244 = vmatprep.subr.bf16.mxu0 0
    %245 = vmatpush2.bf16.msra.mxu0 %v202
    %246 = vmatprep.subr.bf16.mxu0 0
    %247 = vmatpush2.bf16.msra.mxu0 %v201
    %248 = vmatprep.subr.bf16.mxu0 0
    %249 = vmatpush2.bf16.msra.mxu0 %v200
    %250 = vmatprep.subr.bf16.mxu0 0
    %251 = vmatpush2.bf16.msra.mxu0 %v199
    %252 = vmatprep.subr.bf16.mxu0 0
    %253 = vmatpush2.bf16.msra.mxu0 %v198
    %254 = vmatprep.mubr.bf16.mxu0 %v119
    %255 = vmatmul.mubr.bf16.gmra.mxu0 %v118
    %v256 = vpop.f32.mrf.mxu0
    %v257 = vadd.f32 %v124, %v256
    %v258 = vpop.f32.mrf.mxu0
    %v259 = vpop.f32.mrf.mxu0
    %v260 = vpop.f32.mrf.mxu0
    %261 = vdwg.mxu0
    %v262 = vtanh.pop %v257
    %v263 = vpack.c.bf16 %v262, %v262
    %264 = vst [vmem:[#allocation2] sm:$0xf] %v263
    %v265 = vld [vmem:[#allocation2] sm:$0x3]
    %v266 = vld [vmem:[#allocation2] sm:$0xc]
    %v268 = vunpack.c.l.b16 %v266
    %v269 = vpack.c.b16 %v268, %v268
    %v270 = vrot.slane %v269, 2
    %272 = vmatprep.subr.bf16.mxu0 0
    %273 = vmatpush1.bf16.msra.mxu0 %v197
    %274 = vmatprep.subr.bf16.mxu0 0
    %275 = vmatpush1.bf16.msra.mxu0 %v196
    %276 = vmatprep.subr.bf16.mxu0 0
    %277 = vmatpush1.bf16.msra.mxu0 %v195
    %278 = vmatprep.subr.bf16.mxu0 0
    %279 = vmatpush1.bf16.msra.mxu0 %v194
    %280 = vmatprep.subr.bf16.mxu0 0
    %281 = vmatpush1.bf16.msra.mxu0 %v193
    %282 = vmatprep.subr.bf16.mxu0 0
    %283 = vmatpush1.bf16.msra.mxu0 %v192
    %284 = vmatprep.subr.bf16.mxu0 0
    %285 = vmatpush1.bf16.msra.mxu0 %v191
    %286 = vmatprep.subr.bf16.mxu0 0
    %287 = vmatpush1.bf16.msra.mxu0 %v190
    %288 = vmatprep.subr.bf16.mxu0 0
    %289 = vmatpush2.bf16.msra.mxu0 %v205
    %290 = vmatprep.subr.bf16.mxu0 0
    %291 = vmatpush2.bf16.msra.mxu0 %v204
    %292 = vmatprep.subr.bf16.mxu0 0
    %293 = vmatpush2.bf16.msra.mxu0 %v203
    %294 = vmatprep.subr.bf16.mxu0 0
    %295 = vmatpush2.bf16.msra.mxu0 %v202
    %296 = vmatprep.subr.bf16.mxu0 0
    %297 = vmatpush2.bf16.msra.mxu0 %v201
    %298 = vmatprep.subr.bf16.mxu0 0
    %299 = vmatpush2.bf16.msra.mxu0 %v200
    %300 = vmatprep.subr.bf16.mxu0 0
    %301 = vmatpush2.bf16.msra.mxu0 %v199
    %302 = vmatprep.subr.bf16.mxu0 0
    %303 = vmatpush2.bf16.msra.mxu0 %v198
    %304 = vmatprep.mubr.bf16.mxu0 %v270
    %305 = vmatmul.mubr.bf16.gmra.mxu0 %v265
    %v306 = vpop.f32.mrf.mxu0
    %v307 = vadd.f32 %v124, %v306
    %v308 = vpop.f32.mrf.mxu0
    %v309 = vpop.f32.mrf.mxu0
    %v310 = vpop.f32.mrf.mxu0
    %311 = vdwg.mxu0
    %v312 = vtanh.pop %v307
    %v313 = vpack.c.bf16 %v312, %v312
    %314 = vst [vmem:[#allocation2 + $0x4] sm:$0x3] %v313
    %v315 = vld [vmem:[#allocation2 + $0x4] sm:$0x1]
    %v316 = vld [vmem:[#allocation2 + $0x4] sm:$0x2]
    %v318 = vunpack.c.l.b16 %v316
    %v319 = vpack.c.b16 %v318, %v318
    %v320 = vrot.slane %v319, 1
    %322 = vmatprep.subr.bf16.mxu0 0
    %323 = vmatpush1.bf16.msra.mxu0 %v197
    %324 = vmatprep.subr.bf16.mxu0 0
    %325 = vmatpush1.bf16.msra.mxu0 %v196
    %326 = vmatprep.subr.bf16.mxu0 0
    %327 = vmatpush1.bf16.msra.mxu0 %v195
    %328 = vmatprep.subr.bf16.mxu0 0
    %329 = vmatpush1.bf16.msra.mxu0 %v194
    %330 = vmatprep.subr.bf16.mxu0 0
    %331 = vmatpush1.bf16.msra.mxu0 %v193
    %332 = vmatprep.subr.bf16.mxu0 0
    %333 = vmatpush1.bf16.msra.mxu0 %v192
    %334 = vmatprep.subr.bf16.mxu0 0
    %335 = vmatpush1.bf16.msra.mxu0 %v191
    %336 = vmatprep.subr.bf16.mxu0 0
    %337 = vmatpush1.bf16.msra.mxu0 %v190
    %338 = vmatprep.subr.bf16.mxu0 0
    %339 = vmatpush2.bf16.msra.mxu0 %v205
    %340 = vmatprep.subr.bf16.mxu0 0
    %341 = vmatpush2.bf16.msra.mxu0 %v204
    %342 = vmatprep.subr.bf16.mxu0 0
    %343 = vmatpush2.bf16.msra.mxu0 %v203
    %344 = vmatprep.subr.bf16.mxu0 0
    %345 = vmatpush2.bf16.msra.mxu0 %v202
    %346 = vmatprep.subr.bf16.mxu0 0
    %347 = vmatpush2.bf16.msra.mxu0 %v201
    %348 = vmatprep.subr.bf16.mxu0 0
    %349 = vmatpush2.bf16.msra.mxu0 %v200
    %350 = vmatprep.subr.bf16.mxu0 0
    %351 = vmatpush2.bf16.msra.mxu0 %v199
    %352 = vmatprep.subr.bf16.mxu0 0
    %353 = vmatpush2.bf16.msra.mxu0 %v198
    %354 = vmatprep.mubr.bf16.mxu0 %v320
    %355 = vmatmul.mubr.bf16.gmra.mxu0 %v315
    %v356 = vpop.f32.mrf.mxu0
    %v357 = vadd.f32 %v124, %v356
    %v358 = vpop.f32.mrf.mxu0
    %v359 = vpop.f32.mrf.mxu0
    %v360 = vpop.f32.mrf.mxu0
    %361 = vdwg.mxu0
    %v362 = vtanh.pop %v357
    %363 = vst [vmem:[#allocation9] sm:$0x3] %v362
    %v364 = vpack.c.bf16 %v362, %v362
    %365 = vst [vmem:[#allocation3] sm:$0x1] %v364
    %v367 = vunpack.c.l.b16 %v364
    %v368 = vpack.c.b16 %v367, %v367
    %v369 = vrot.slane %v368, 7
    %371 = vst [vmem:[#allocation3] sm:$0x2] %v369
    %v372 = vld [vmem:[#allocation2 + $0x4] sm:$0x3]
    %v373 = vld [vmem:[#allocation3] sm:$0x3]
    %v375 = vlaneseq
    %v376 = vshrl.u32 %v375, 7
    %v377 = vsub.s32 0, %v376
    %v378 = vrot.slane %v117, %v377
    %v412 = vunpack.c.l.b16 %v84
    %v413 = vunpack.c.l.b16 %v85
    %v414 = vunpack.c.l.b16 %v86
    %v415 = vunpack.c.l.b16 %v87
    %v416 = vunpack.c.l.b16 %v88
    %v417 = vunpack.c.l.b16 %v89
    %v418 = vunpack.c.l.b16 %v90
    %v419 = vunpack.c.l.b16 %v91
    %v420 = vunpack.c.l.b16 %v92
    %v421 = vunpack.c.l.b16 %v93
    %v422 = vunpack.c.l.b16 %v94
    %v423 = vunpack.c.l.b16 %v95
    %v424 = vunpack.c.l.b16 %v96
    %v425 = vunpack.c.l.b16 %v97
    %v426 = vunpack.c.l.b16 %v98
    %v427 = vunpack.c.l.b16 %v99
    %v428 = vunpack.c.l.b16 %v100
    %v429 = vunpack.c.l.b16 %v101
    %v430 = vunpack.c.l.b16 %v102
    %v431 = vunpack.c.l.b16 %v103
    %v432 = vunpack.c.l.b16 %v104
    %v433 = vunpack.c.l.b16 %v105
    %v434 = vunpack.c.l.b16 %v106
    %v435 = vunpack.c.l.b16 %v107
    %v436 = vunpack.c.l.b16 %v108
    %v437 = vunpack.c.l.b16 %v109
    %v438 = vunpack.c.l.b16 %v110
    %v439 = vunpack.c.l.b16 %v111
    %v440 = vunpack.c.l.b16 %v112
    %v441 = vunpack.c.l.b16 %v113
    %v442 = vunpack.c.l.b16 %v114
    %v443 = vunpack.c.l.b16 %v115
    %v444 = vpack.c.b16 %v413, %v412
    %v445 = vpack.c.b16 %v415, %v414
    %v446 = vpack.c.b16 %v417, %v416
    %v447 = vpack.c.b16 %v419, %v418
    %v448 = vpack.c.b16 %v421, %v420
    %v449 = vpack.c.b16 %v423, %v422
    %v450 = vpack.c.b16 %v425, %v424
    %v451 = vpack.c.b16 %v427, %v426
    %v452 = vpack.c.b16 %v429, %v428
    %v453 = vpack.c.b16 %v431, %v430
    %v454 = vpack.c.b16 %v433, %v432
    %v455 = vpack.c.b16 %v435, %v434
    %v456 = vpack.c.b16 %v437, %v436
    %v457 = vpack.c.b16 %v439, %v438
    %v458 = vpack.c.b16 %v441, %v440
    %v459 = vpack.c.b16 %v443, %v442
    %476 = vmatprep.subr.bf16.mxu0 0
    %477 = vmatpush1.bf16.msra.mxu0 %v451
    %478 = vmatprep.subr.bf16.mxu0 0
    %479 = vmatpush1.bf16.msra.mxu0 %v450
    %480 = vmatprep.subr.bf16.mxu0 0
    %481 = vmatpush1.bf16.msra.mxu0 %v449
    %482 = vmatprep.subr.bf16.mxu0 0
    %483 = vmatpush1.bf16.msra.mxu0 %v448
    %484 = vmatprep.subr.bf16.mxu0 0
    %485 = vmatpush1.bf16.msra.mxu0 %v447
    %486 = vmatprep.subr.bf16.mxu0 0
    %487 = vmatpush1.bf16.msra.mxu0 %v446
    %488 = vmatprep.subr.bf16.mxu0 0
    %489 = vmatpush1.bf16.msra.mxu0 %v445
    %490 = vmatprep.subr.bf16.mxu0 0
    %491 = vmatpush1.bf16.msra.mxu0 %v444
    %492 = vmatprep.subr.bf16.mxu0 0
    %493 = vmatpush2.bf16.msra.mxu0 %v459
    %494 = vmatprep.subr.bf16.mxu0 0
    %495 = vmatpush2.bf16.msra.mxu0 %v458
    %496 = vmatprep.subr.bf16.mxu0 0
    %497 = vmatpush2.bf16.msra.mxu0 %v457
    %498 = vmatprep.subr.bf16.mxu0 0
    %499 = vmatpush2.bf16.msra.mxu0 %v456
    %500 = vmatprep.subr.bf16.mxu0 0
    %501 = vmatpush2.bf16.msra.mxu0 %v455
    %502 = vmatprep.subr.bf16.mxu0 0
    %503 = vmatpush2.bf16.msra.mxu0 %v454
    %504 = vmatprep.subr.bf16.mxu0 0
    %505 = vmatpush2.bf16.msra.mxu0 %v453
    %506 = vmatprep.subr.bf16.mxu0 0
    %507 = vmatpush2.bf16.msra.mxu0 %v452
    %508 = vmatprep.mubr.bf16.mxu0 %v372
    %509 = vmatmul.mubr.bf16.gmra.mxu0 %v373
    %v510 = vpop.f32.mrf.mxu0
    %v511 = vadd.f32 %v378, %v510
    %v512 = vpop.f32.mrf.mxu0
    %v513 = vpop.f32.mrf.mxu0
    %v514 = vpop.f32.mrf.mxu0
    %515 = vdwg.mxu0
    %v516 = vtanh.pop %v511
    %v517 = vpack.c.bf16 %v516, %v516
    %518 = vst [vmem:[#allocation3] sm:$0x3] %v517
    %v520 = vunpack.c.l.b16 %v517
    %v521 = vpack.c.b16 %v520, %v520
    %v522 = vrot.slane %v521, 6
    %524 = vst [vmem:[#allocation3] sm:$0xc] %v522
    %v525 = vld [vmem:[#allocation2] sm:$0xf]
    %v526 = vld [vmem:[#allocation3] sm:$0xf]
    %527 = vmatprep.subr.bf16.mxu0 0
    %528 = vmatpush1.bf16.msra.mxu0 %v451
    %529 = vmatprep.subr.bf16.mxu0 0
    %530 = vmatpush1.bf16.msra.mxu0 %v450
    %531 = vmatprep.subr.bf16.mxu0 0
    %532 = vmatpush1.bf16.msra.mxu0 %v449
    %533 = vmatprep.subr.bf16.mxu0 0
    %534 = vmatpush1.bf16.msra.mxu0 %v448
    %535 = vmatprep.subr.bf16.mxu0 0
    %536 = vmatpush1.bf16.msra.mxu0 %v447
    %537 = vmatprep.subr.bf16.mxu0 0
    %538 = vmatpush1.bf16.msra.mxu0 %v446
    %539 = vmatprep.subr.bf16.mxu0 0
    %540 = vmatpush1.bf16.msra.mxu0 %v445
    %541 = vmatprep.subr.bf16.mxu0 0
    %542 = vmatpush1.bf16.msra.mxu0 %v444
    %543 = vmatprep.subr.bf16.mxu0 0
    %544 = vmatpush2.bf16.msra.mxu0 %v459
    %545 = vmatprep.subr.bf16.mxu0 0
    %546 = vmatpush2.bf16.msra.mxu0 %v458
    %547 = vmatprep.subr.bf16.mxu0 0
    %548 = vmatpush2.bf16.msra.mxu0 %v457
    %549 = vmatprep.subr.bf16.mxu0 0
    %550 = vmatpush2.bf16.msra.mxu0 %v456
    %551 = vmatprep.subr.bf16.mxu0 0
    %552 = vmatpush2.bf16.msra.mxu0 %v455
    %553 = vmatprep.subr.bf16.mxu0 0
    %554 = vmatpush2.bf16.msra.mxu0 %v454
    %555 = vmatprep.subr.bf16.mxu0 0
    %556 = vmatpush2.bf16.msra.mxu0 %v453
    %557 = vmatprep.subr.bf16.mxu0 0
    %558 = vmatpush2.bf16.msra.mxu0 %v452
    %559 = vmatprep.mubr.bf16.mxu0 %v525
    %560 = vmatmul.mubr.bf16.gmra.mxu0 %v526
    %v561 = vpop.f32.mrf.mxu0
    %v562 = vadd.f32 %v378, %v561
    %v563 = vpop.f32.mrf.mxu0
    %v564 = vpop.f32.mrf.mxu0
    %v565 = vpop.f32.mrf.mxu0
    %566 = vdwg.mxu0
    %v567 = vtanh.pop %v562
    %v568 = vpack.c.bf16 %v567, %v567
    %569 = vst [vmem:[#allocation3] sm:$0xf] %v568
    %570 = vst [vmem:[#allocation3 + $0x4] sm:$0xf] %v568
    %v571 = vld [vmem:[%s0] sm:$0xf]
    %v572 = vld [vmem:[%s0 + $0x4] sm:$0xf]
    %v573 = vld [vmem:[#allocation3] sm:$0xf]
    %v574 = vld [vmem:[#allocation3 + $0x4] sm:$0xf]
    %v577 = vunpack.c.l.b16 %v573
    %v578 = vunpack.c.l.b16 %v574
    %v579 = vpack.c.b16 %v578, %v577
    %v583 = vunpack.c.l.b16 %v571
    %v584 = vunpack.c.l.b16 %v572
    %v585 = vpack.c.b16 %v584, %v583
    %587 = vmatprep.subr.bf16.mxu0 0
    %588 = vmatpush1.bf16.msra.mxu0 %v451
    %589 = vmatprep.subr.bf16.mxu0 0
    %590 = vmatpush1.bf16.msra.mxu0 %v450
    %591 = vmatprep.subr.bf16.mxu0 0
    %592 = vmatpush1.bf16.msra.mxu0 %v449
    %593 = vmatprep.subr.bf16.mxu0 0
    %594 = vmatpush1.bf16.msra.mxu0 %v448
    %595 = vmatprep.subr.bf16.mxu0 0
    %596 = vmatpush1.bf16.msra.mxu0 %v447
    %597 = vmatprep.subr.bf16.mxu0 0
    %598 = vmatpush1.bf16.msra.mxu0 %v446
    %599 = vmatprep.subr.bf16.mxu0 0
    %600 = vmatpush1.bf16.msra.mxu0 %v445
    %601 = vmatprep.subr.bf16.mxu0 0
    %602 = vmatpush1.bf16.msra.mxu0 %v444
    %603 = vmatprep.subr.bf16.mxu0 0
    %604 = vmatpush2.bf16.msra.mxu0 %v459
    %605 = vmatprep.subr.bf16.mxu0 0
    %606 = vmatpush2.bf16.msra.mxu0 %v458
    %607 = vmatprep.subr.bf16.mxu0 0
    %608 = vmatpush2.bf16.msra.mxu0 %v457
    %609 = vmatprep.subr.bf16.mxu0 0
    %610 = vmatpush2.bf16.msra.mxu0 %v456
    %611 = vmatprep.subr.bf16.mxu0 0
    %612 = vmatpush2.bf16.msra.mxu0 %v455
    %613 = vmatprep.subr.bf16.mxu0 0
    %614 = vmatpush2.bf16.msra.mxu0 %v454
    %615 = vmatprep.subr.bf16.mxu0 0
    %616 = vmatpush2.bf16.msra.mxu0 %v453
    %617 = vmatprep.subr.bf16.mxu0 0
    %618 = vmatpush2.bf16.msra.mxu0 %v452
    %619 = vmatprep.mubr.bf16.mxu0 %v585
    %620 = vmatmul.mubr.bf16.gmra.mxu0 %v579
    %v621 = vpop.f32.mrf.mxu0
    %v622 = vadd.f32 %v378, %v621
    %v623 = vpop.f32.mrf.mxu0
    %v624 = vpop.f32.mrf.mxu0
    %v625 = vadd.f32 %v378, %v624
    %v626 = vpop.f32.mrf.mxu0
    %627 = vdwg.mxu0
    %v628 = vtanh.pop %v622
    %v629 = vtanh.pop %v625
    %630 = vst [vmem:[%s6] sm:$0xff] %v628
    %631 = vst [vmem:[%s6 + $0x8] sm:$0xff] %v629
    // Predicated region
    $region30: #{_tree_forward.1} parent=1 // pred_check
      _
    $region31: #{_tree_forward.1} parent=1 // pred_check_branch
      %633 = sbr.rel (0) target = $region33
    $region32: #{_tree_forward.1} parent=1 // pred_region
      %s635 = ssub.s32 32, 32
      %636 = vsyncadd [#allocation6], %s635
      %s638 = sshll.u32 [#allocation9], 4
      %s639 = int_to_ptr.vmem [resolvable:$true] %s638
      %641 = dma.vmem_to_hbm [thread:$0]  %s639, 32, %s5, [#allocation6]
    $region33: #{_tree_forward.1} parent=1 // pred_fallthru
      _
    // Predicated region
    $region34: #{_tree_forward.1} parent=1 // pred_check
      _
    $region35: #{_tree_forward.1} parent=1 // pred_check_branch
      %643 = sbr.rel (0) target = $region37
    $region36: #{_tree_forward.1} parent=1 // pred_region
      _
    $region37: #{_tree_forward.1} parent=1 // pred_fallthru
      _
    // Predicated region
    $region38: #{_tree_forward.1} parent=1 // pred_check
      _
    $region39: #{_tree_forward.1} parent=1 // pred_check_branch
      %645 = sbr.rel (0) target = $region41
    $region40: #{_tree_forward.1} parent=1 // pred_region
      %646 = dma.done [#allocation6], 32
    $region41: #{_tree_forward.1} parent=1 // pred_fallthru
      _
    // Predicated region
    $region42: #{_tree_forward.1} parent=1 // pred_check
      _
    $region43: #{_tree_forward.1} parent=1 // pred_check_branch
      %648 = sbr.rel (0) target = $region45
    $region44: #{_tree_forward.1} parent=1 // pred_region
      _
    $region45: #{_tree_forward.1} parent=1 // pred_fallthru
      _
    %649 = vsyncpa [#allocation5], 1
    %650 = vsyncpa [#allocation8], 1
    %651 = vsyncpa [#allocation6], 1

</llo_original>
